<compile_context>
chip_gen: v7x
topology: tpu7x:2x2x1
jax: 0.10.0
libtpu: 0.0.40
codegen_flags: <defaults>
</compile_context>

<pallas_src>
import jax
import jax.numpy as jnp
from jax.experimental import pallas as pl
from jax.experimental.pallas import tpu as pltpu


def _round_up(x, m):
    return (x + m - 1) // m * m


def _make_kernel(with_tol, use_mxu, g, D, tile_b, B, has_pad):
    def kernel(*refs):
        idx = 2
        mu_ref, var_ref = refs[0], refs[1]
        if with_tol and use_mxu:
            seg_ref = refs[idx]
            idx += 1
        o_ref = refs[idx]
        idx += 1
        acc_sum = refs[idx]
        idx += 1
        acc_max = refs[idx] if with_tol else None

        t = pl.program_id(0)
        n_t = pl.num_programs(0)

        @pl.when(t == 0)
        def _init():
            acc_sum[...] = jnp.zeros_like(acc_sum)
            if with_tol:
                acc_max[...] = jnp.full_like(acc_max, -jnp.inf)

        m = mu_ref[...].astype(jnp.float32)
        v = var_ref[...].astype(jnp.float32)
        elem = 1.0 + v - m * m - jnp.exp(v)          # VPU + EUP, full lane-dense block

        # Mean path: full-block f32 accumulate (padded rows contribute exactly 0).
        acc_sum[...] += elem

        if with_tol:
            # Per-original-row KL: block-diagonal ones matmul on the idle MXU
            # (g segments of D lanes per block row), or plain lane reduce if g == 1.
            if use_mxu:
                seg_kld = -0.5 * jnp.dot(elem, seg_ref[...],
                                         preferred_element_type=jnp.float32)
            else:
                seg_kld = -0.5 * jnp.sum(elem, axis=-1, keepdims=True)

            def _accum_masked():
                r = t * tile_b + jax.lax.broadcasted_iota(jnp.int32, (tile_b, g), 0)
                k = jax.lax.broadcasted_iota(jnp.int32, (tile_b, g), 1)
                valid = (r * g + k) < B
                acc_max[...] = jnp.maximum(
                    acc_max[...], jnp.where(valid, seg_kld, -jnp.inf))

            def _accum_plain():
                acc_max[...] = jnp.maximum(acc_max[...], seg_kld)

            if has_pad:
                # Padding lives only in the very last tile; every other step
                # skips the mask entirely.
                pl.when(t == n_t - 1)(_accum_masked)
                pl.when(t != n_t - 1)(_accum_plain)
            else:
                _accum_plain()

        @pl.when(t == n_t - 1)
        def _finalize():
            o_ref[0, 0] = -0.5 * jnp.sum(acc_sum[...])
            if with_tol:
                o_ref[0, 1] = jnp.max(acc_max[...])

    return kernel


def kl_loss(mu, var, kl_tolerance=None, *, tile_rows=None, target_block_bytes=2 << 20):
    assert mu.ndim == 2 and mu.shape == var.shape, "expects (batch, latent) inputs"
    B, D = mu.shape
    itemsize = jnp.dtype(mu.dtype).itemsize
    sub = max(8, 32 // max(1, itemsize))          # sublane quantum: 8 f32 / 16 bf16

    # --- lane-dense fold: pack g batch rows into the 128-lane minor dim ---
    g = 128 // D if (D < 128 and 128 % D == 0) else 1
    Dp = g * D

    # --- batch tile (folded rows), ~target_block_bytes per input per step ---
    if tile_rows is None:
        tile_rows = max(sub, (target_block_bytes // max(1, Dp * itemsize)) // sub * sub)
    R = -(-B // g)                                 # folded rows needed (ceil)
    tile_b = max(sub, min(_round_up(R, sub), _round_up(tile_rows, sub)))
    Rp = _round_up(R, tile_b)
    n_tiles = Rp // tile_b
    Bp = Rp * g
    has_pad = Bp != B

    if has_pad:                                    # single pad covers fold + tile remainder
        mu = jnp.pad(mu, ((0, Bp - B), (0, 0)))
        var = jnp.pad(var, ((0, Bp - B), (0, 0)))
    muf = mu.reshape(Rp, Dp)                       # free bitcast reshape when no pad
    varf = var.reshape(Rp, Dp)

    with_tol = kl_tolerance is not None
    use_mxu = with_tol and g > 1

    in_specs = [pl.BlockSpec((tile_b, Dp), lambda t: (t, 0)),
                pl.BlockSpec((tile_b, Dp), lambda t: (t, 0))]
    inputs = [muf, varf]
    if use_mxu:
        # Constant (Dp, g) block-diagonal ones: segment-sum matrix for the MXU.
        seg = (jnp.arange(Dp)[:, None] // D == jnp.arange(g)[None, :]).astype(jnp.float32)
        in_specs.append(pl.BlockSpec((Dp, g), lambda t: (0, 0)))
        inputs.append(seg)

    scratch = [pltpu.VMEM((tile_b, Dp), jnp.float32)]
    if with_tol:
        scratch.append(pltpu.VMEM((tile_b, g), jnp.float32))

    n_out = 2 if with_tol else 1

    out = pl.pallas_call(
        _make_kernel(with_tol, use_mxu, g, D, tile_b, B, has_pad),
        out_shape=jax.ShapeDtypeStruct((1, n_out), jnp.float32),
        grid_spec=pltpu.PrefetchScalarGridSpec(
            num_scalar_prefetch=0,
            grid=(n_tiles,),
            in_specs=in_specs,
            out_specs=pl.BlockSpec((1, n_out), lambda t: (0, 0),
                                   memory_space=pltpu.SMEM),
            scratch_shapes=scratch,
        ),
        compiler_params=pltpu.CompilerParams(
            dimension_semantics=("arbitrary",),
            vmem_limit_bytes=32 * 1024 * 1024,
        ),
    )(*inputs)

    mean_kld = out[0, 0] / jnp.float32(B)
    if not with_tol:
        return mean_kld
    max_kld = out[0, 1]
    tol = jnp.asarray(kl_tolerance, jnp.float32)   # runtime compare in wrapper; kernel
    return jnp.where(max_kld > tol, mean_kld, jnp.float32(0.0))  # never recompiles per tol


def _ref_kl(mu, var, tol):
    mu = mu.astype(jnp.float32)
    var = var.astype(jnp.float32)
    kld = -0.5 * jnp.sum(1.0 + var - mu ** 2 - jnp.exp(var), axis=1)
    m = jnp.mean(kld)
    if tol is None:
        return m
    return jnp.where(jnp.any(kld > tol), m, jnp.float32(0.0))


if __name__ == "__main__":
    key = jax.random.PRNGKey(0)
    k1, k2, k3, k4, k5, k6 = jax.random.split(key, 6)

    # Standard VAE-style inputs: mu, var (log-variance) of shape (batch, latent).
    B, D = 8, 32                      # D=32 -> fold factor g=4 (MXU segment reduce)
    mu = jax.random.normal(k1, (B, D), dtype=jnp.float32)
    var = jax.random.normal(k2, (B, D), dtype=jnp.float32)

    for tol in (0.5, 1e6, None):      # mean-branch, zero-branch, no-tolerance
        out = kl_loss(mu, var, kl_tolerance=tol)
        jax.block_until_ready(out)
        ref = _ref_kl(mu, var, tol)
        assert jnp.allclose(out, ref, rtol=1e-4, atol=1e-4), (tol, out, ref)

    # Ragged batch exercises the gated padding mask (batch 6 padded inside kernel).
    mu2 = jax.random.normal(k3, (6, D), dtype=jnp.float32)
    var2 = jax.random.normal(k4, (6, D), dtype=jnp.float32)
    for tol in (0.5, None):
        out = kl_loss(mu2, var2, kl_tolerance=tol)
        jax.block_until_ready(out)
        ref = _ref_kl(mu2, var2, tol)
        assert jnp.allclose(out, ref, rtol=1e-4, atol=1e-4), (tol, out, ref)

    # D=128 exercises the no-fold (g=1) lane-reduce tolerance path.
    mu3 = jax.random.normal(k5, (8, 128), dtype=jnp.float32)
    var3 = jax.random.normal(k6, (8, 128), dtype=jnp.float32)
    for tol in (0.5, None):
        out = kl_loss(mu3, var3, kl_tolerance=tol)
        jax.block_until_ready(out)
        ref = _ref_kl(mu3, var3, tol)
        assert jnp.allclose(out, ref, rtol=1e-4, atol=1e-4), (tol, out, ref)

    # bf16 inputs are streamed in their native dtype (math/accumulation in f32).
    mu4 = mu.astype(jnp.bfloat16)
    var4 = var.astype(jnp.bfloat16)
    out = kl_loss(mu4, var4, kl_tolerance=0.5)
    jax.block_until_ready(out)
    ref = _ref_kl(mu4, var4, 0.5)
    assert jnp.allclose(out, ref, rtol=1e-3, atol=1e-3), (out, ref)

    print("KERNEL_OK")
</pallas_src>

<mosaic_0001>
module attributes {stable_mosaic.version = 11 : i64} {
  func.func @kernel(%arg0: i32, %arg1: memref<8x128xf32, #tpu.memory_space<vmem>>, %arg2: memref<8x128xf32, #tpu.memory_space<vmem>>, %arg3: memref<128x4xf32, #tpu.memory_space<vmem>>, %arg4: memref<1x2xf32, #tpu.memory_space<smem>>, %arg5: memref<8x128xf32, #tpu.memory_space<vmem>>, %arg6: memref<8x4xf32, #tpu.memory_space<vmem>>) attributes {dimension_semantics = [#tpu.dimension_semantics<arbitrary>], iteration_bounds = array<i64: 1>, scalar_prefetch = 0 : i64, scratch_operands = 2 : i64, tpu.core_type = #tpu.core_type<tc>, window_params = [{transform_indices = @transform_0, window_bounds = array<i64: 8, 128>}, {transform_indices = @transform_1, window_bounds = array<i64: 8, 128>}, {pipeline_mode = #tpu.pipeline_mode<synchronous>, transform_indices = @transform_2, window_bounds = array<i64: 128, 4>}, {transform_indices = @transform_3, window_bounds = array<i64: 1, 2>}]} {
    %c0_i32 = arith.constant 0 : i32
    %0 = arith.cmpi eq, %arg0, %c0_i32 : i32
    %1 = arith.extui %0 : i1 to i32
    %c0_i32_0 = arith.constant 0 : i32
    %2 = arith.cmpi ne, %1, %c0_i32_0 : i32
    scf.if %2 {
      %cst_18 = arith.constant 0.000000e+00 : f32
      %27 = vector.broadcast %cst_18 : f32 to vector<8x128xf32>
      %c0_19 = arith.constant 0 : index
      %c0_20 = arith.constant 0 : index
      %28 = vector.load %arg5[%c0_19, %c0_20] : memref<8x128xf32, #tpu.memory_space<vmem>>, vector<8x128xf32>
      tpu.vector_store %arg5[%c0_19, %c0_20], %27 {strides = array<i32>} : memref<8x128xf32, #tpu.memory_space<vmem>>, vector<8x128xf32>,
      %cst_21 = arith.constant 0xFF800000 : f32
      %29 = vector.broadcast %cst_21 : f32 to vector<8x4xf32>
      %c0_22 = arith.constant 0 : index
      %c0_23 = arith.constant 0 : index
      %30 = vector.load %arg6[%c0_22, %c0_23] : memref<8x4xf32, #tpu.memory_space<vmem>>, vector<8x4xf32>
      tpu.vector_store %arg6[%c0_22, %c0_23], %29 {strides = array<i32>} : memref<8x4xf32, #tpu.memory_space<vmem>>, vector<8x4xf32>,
    } else {
    }
    %c0 = arith.constant 0 : index
    %c0_1 = arith.constant 0 : index
    %3 = vector.load %arg1[%c0, %c0_1] : memref<8x128xf32, #tpu.memory_space<vmem>>, vector<8x128xf32>
    %c0_2 = arith.constant 0 : index
    %c0_3 = arith.constant 0 : index
    %4 = vector.load %arg2[%c0_2, %c0_3] : memref<8x128xf32, #tpu.memory_space<vmem>>, vector<8x128xf32>
    %cst = arith.constant 1.000000e+00 : f32
    %5 = vector.broadcast %cst : f32 to vector<8x128xf32>
    %6 = arith.addf %5, %4 : vector<8x128xf32>
    %7 = arith.mulf %3, %3 : vector<8x128xf32>
    %8 = arith.subf %6, %7 : vector<8x128xf32>
    %9 = math.exp %4 : vector<8x128xf32>
    %10 = arith.subf %8, %9 : vector<8x128xf32>
    %c0_4 = arith.constant 0 : index
    %c0_5 = arith.constant 0 : index
    %11 = vector.load %arg5[%c0_4, %c0_5] : memref<8x128xf32, #tpu.memory_space<vmem>>, vector<8x128xf32>
    %12 = arith.addf %11, %10 : vector<8x128xf32>
    %c0_6 = arith.constant 0 : index
    %c0_7 = arith.constant 0 : index
    %13 = vector.load %arg5[%c0_6, %c0_7] : memref<8x128xf32, #tpu.memory_space<vmem>>, vector<8x128xf32>
    tpu.vector_store %arg5[%c0_6, %c0_7], %12 {strides = array<i32>} : memref<8x128xf32, #tpu.memory_space<vmem>>, vector<8x128xf32>,
    %c0_8 = arith.constant 0 : index
    %c0_9 = arith.constant 0 : index
    %14 = vector.load %arg3[%c0_8, %c0_9] : memref<128x4xf32, #tpu.memory_space<vmem>>, vector<128x4xf32>
    %cst_10 = arith.constant dense<0.000000e+00> : vector<8x4xf32>
    %15 = tpu.matmul %10, %14, %cst_10 {dimension_numbers = #tpu.dot_dimension_numbers<[1], [0], [0], [1], [0, 0, 1, 1], [], []>} : vector<8x128xf32>, vector<128x4xf32>, vector<8x4xf32> -> vector<8x4xf32>
    %cst_11 = arith.constant -5.000000e-01 : f32
    %16 = vector.broadcast %cst_11 : f32 to vector<8x4xf32>
    %17 = arith.mulf %16, %15 : vector<8x4xf32>
    %c0_i32_12 = arith.constant 0 : i32
    %18 = arith.cmpi eq, %arg0, %c0_i32_12 : i32
    %19 = arith.extui %18 : i1 to i32
    %c0_i32_13 = arith.constant 0 : i32
    %20 = arith.cmpi ne, %19, %c0_i32_13 : i32
    scf.if %20 {
      %c8_i32 = arith.constant 8 : i32
      %27 = arith.muli %arg0, %c8_i32 : i32
      %28 = tpu.iota {dimensions = array<i32: 0>} : vector<8x4xi32>
      %29 = vector.broadcast %27 : i32 to vector<8x4xi32>
      %30 = arith.addi %29, %28 : vector<8x4xi32>
      %31 = tpu.iota {dimensions = array<i32: 1>} : vector<8x4xi32>
      %c4_i32 = arith.constant 4 : i32
      %32 = vector.broadcast %c4_i32 : i32 to vector<8x4xi32>
      %33 = arith.muli %30, %32 : vector<8x4xi32>
      %34 = arith.addi %33, %31 : vector<8x4xi32>
      %c8_i32_18 = arith.constant 8 : i32
      %35 = vector.broadcast %c8_i32_18 : i32 to vector<8x4xi32>
      %36 = arith.cmpi slt, %34, %35 : vector<8x4xi32>
      %c0_19 = arith.constant 0 : index
      %c0_20 = arith.constant 0 : index
      %37 = vector.load %arg6[%c0_19, %c0_20] : memref<8x4xf32, #tpu.memory_space<vmem>>, vector<8x4xf32>
      %cst_21 = arith.constant 0xFF800000 : f32
      %38 = vector.broadcast %cst_21 : f32 to vector<8x4xf32>
      %39 = arith.select %36, %17, %38 : vector<8x4xi1>, vector<8x4xf32>
      %40 = arith.maximumf %37, %39 : vector<8x4xf32>
      %c0_22 = arith.constant 0 : index
      %c0_23 = arith.constant 0 : index
      %41 = vector.load %arg6[%c0_22, %c0_23] : memref<8x4xf32, #tpu.memory_space<vmem>>, vector<8x4xf32>
      tpu.vector_store %arg6[%c0_22, %c0_23], %40 {strides = array<i32>} : memref<8x4xf32, #tpu.memory_space<vmem>>, vector<8x4xf32>,
    } else {
    }
    %c0_i32_14 = arith.constant 0 : i32
    %21 = arith.cmpi ne, %arg0, %c0_i32_14 : i32
    %22 = arith.extui %21 : i1 to i32
    %c0_i32_15 = arith.constant 0 : i32
    %23 = arith.cmpi ne, %22, %c0_i32_15 : i32
    scf.if %23 {
      %c0_18 = arith.constant 0 : index
      %c0_19 = arith.constant 0 : index
      %27 = vector.load %arg6[%c0_18, %c0_19] : memref<8x4xf32, #tpu.memory_space<vmem>>, vector<8x4xf32>
      %28 = arith.maximumf %27, %17 : vector<8x4xf32>
      %c0_20 = arith.constant 0 : index
      %c0_21 = arith.constant 0 : index
      %29 = vector.load %arg6[%c0_20, %c0_21] : memref<8x4xf32, #tpu.memory_space<vmem>>, vector<8x4xf32>
      tpu.vector_store %arg6[%c0_20, %c0_21], %28 {strides = array<i32>} : memref<8x4xf32, #tpu.memory_space<vmem>>, vector<8x4xf32>,
    } else {
    }
    %c0_i32_16 = arith.constant 0 : i32
    %24 = arith.cmpi eq, %arg0, %c0_i32_16 : i32
    %25 = arith.extui %24 : i1 to i32
    %c0_i32_17 = arith.constant 0 : i32
    %26 = arith.cmpi ne, %25, %c0_i32_17 : i32
    scf.if %26 {
      %c0_18 = arith.constant 0 : index
      %c0_19 = arith.constant 0 : index
      %27 = vector.load %arg5[%c0_18, %c0_19] : memref<8x128xf32, #tpu.memory_space<vmem>>, vector<8x128xf32>
      %28 = vector.shape_cast %27 : vector<8x128xf32> to vector<1x8x128xf32>
      %cst_20 = arith.constant dense<0.000000e+00> : vector<1xf32>
      %29 = vector.multi_reduction <add>, %28, %cst_20 [1, 2] : vector<1x8x128xf32> to vector<1xf32>
      %30 = vector.shape_cast %29 : vector<1xf32> to vector<1x1x1xf32>
      %31 = vector.extract %30[0, 0, 0] : f32 from vector<1x1x1xf32>
      %cst_21 = arith.constant -5.000000e-01 : f32
      %32 = arith.mulf %cst_21, %31 : f32
      %c0_22 = arith.constant 0 : index
      %c0_23 = arith.constant 0 : index
      %33 = memref.load %arg4[%c0_22, %c0_23] : memref<1x2xf32, #tpu.memory_space<smem>>
      memref.store %32, %arg4[%c0_22, %c0_23] : memref<1x2xf32, #tpu.memory_space<smem>>
      %c0_24 = arith.constant 0 : index
      %c0_25 = arith.constant 0 : index
      %34 = vector.load %arg6[%c0_24, %c0_25] : memref<8x4xf32, #tpu.memory_space<vmem>>, vector<8x4xf32>
      %35 = vector.shape_cast %34 : vector<8x4xf32> to vector<1x8x4xf32>
      %cst_26 = arith.constant dense<0xFF800000> : vector<1xf32>
      %36 = vector.multi_reduction <maximumf>, %35, %cst_26 [1, 2] : vector<1x8x4xf32> to vector<1xf32>
      %37 = vector.shape_cast %36 : vector<1xf32> to vector<1x1x1xf32>
      %38 = vector.extract %37[0, 0, 0] : f32 from vector<1x1x1xf32>
      %c0_27 = arith.constant 0 : index
      %c1 = arith.constant 1 : index
      %39 = memref.load %arg4[%c0_27, %c1] : memref<1x2xf32, #tpu.memory_space<smem>>
      memref.store %38, %arg4[%c0_27, %c1] : memref<1x2xf32, #tpu.memory_space<smem>>
    } else {
    }
    return
  }
  func.func @transform_0(%arg0: i32) -> (i32, i32) {
    %c0_i32 = arith.constant 0 : i32
    %c0_i32_0 = arith.constant 0 : i32
    return %arg0, %c0_i32 : i32, i32
  }
  func.func @transform_1(%arg0: i32) -> (i32, i32) {
    %c0_i32 = arith.constant 0 : i32
    %c0_i32_0 = arith.constant 0 : i32
    return %arg0, %c0_i32 : i32, i32
  }
  func.func @transform_2(%arg0: i32) -> (i32, i32) {
    %c0_i32 = arith.constant 0 : i32
    %c0_i32_0 = arith.constant 0 : i32
    %c0_i32_1 = arith.constant 0 : i32
    return %c0_i32, %c0_i32_0 : i32, i32
  }
  func.func @transform_3(%arg0: i32) -> (i32, i32) {
    %c0_i32 = arith.constant 0 : i32
    %c0_i32_0 = arith.constant 0 : i32
    %c0_i32_1 = arith.constant 0 : i32
    return %c0_i32, %c0_i32_0 : i32, i32
  }
}

</mosaic_0001>

<llo_original>
// kernel: tpu_custom_call.1
$region0: #{tpu_custom_call.1}
  #allocation0 [shape = 'u32[]', space=smem, size = 0x4, offset = 0x4, fixed_abs, tag = 'smem constant byte address 0x4 - core index']
  #allocation1 [shape = 'u32[144,128]{1,0:T(1,128)}', space=vmem, size = 0x12000, scoped, tag = 'internal scratch']
  #allocation2 [shape = 'f32[8,128]{1,0:T(8,128)}', space=vmem, size = 0x1000, scoped, tag = 'scratch operand']
  #allocation3 [shape = 'f32[8,4]{1,0:T(8,128)}', space=vmem, size = 0x1000, scoped, tag = 'scratch operand']
  %s0 = inlined_call_operand.vmem [shape: f32[8,128], index: 0, kind: input, shape index: {}]
  %s1 = inlined_call_operand.vmem [shape: f32[8,128], index: 1, kind: input, shape index: {}]
  %s2 = inlined_call_operand.vmem [shape: f32[128,4], index: 2, kind: input, shape index: {}]
  %s3 = inlined_call_operand.hbm [shape: f32[1,2], index: 3, kind: output, shape index: {}]
  %s4 = sld [smem:[#allocation0]]
  $region38: #{tpu_custom_call.1} parent=0
    _
  %s6 = ssub.s32 1, %s4
  %s7 = scalar_select 0, %s6, %s4
  $region1: #{tpu_custom_call.1} parent=0
    #allocation4 [shape = 'u8[512]{0}', space=smem, size = 0x200, scoped, tag = 'output window, operand 0, single buffered']
    #allocation5 [shape = 's32[1]{0}', space=sflag, size = 0x4, scoped, tag = 'scoped memory for tpu_custom_call.1']
    %8 = vsyncpa [#allocation5], 0
    // Predicated region
    $region2: #{tpu_custom_call.1} parent=1 // pred_check
      _
    $region3: #{tpu_custom_call.1} parent=1 // pred_check_branch
      %10 = sbr.rel (0) target = $region5
    $region4: #{tpu_custom_call.1} parent=1 // pred_region
      _
    $region5: #{tpu_custom_call.1} parent=1 // pred_fallthru
      _
    // Predicated region
    $region6: #{tpu_custom_call.1} parent=1 // pred_check
      _
    $region7: #{tpu_custom_call.1} parent=1 // pred_check_branch
      %12 = sbr.rel (0) target = $region9
    $region8: #{tpu_custom_call.1} parent=1 // pred_region
      _
    $region9: #{tpu_custom_call.1} parent=1 // pred_fallthru
      _
    // Predicated region
    $region10: #{tpu_custom_call.1} parent=1 // pred_check
      _
    $region11: #{tpu_custom_call.1} parent=1 // pred_check_branch
      %14 = sbr.rel (0) target = $region13
    $region12: #{tpu_custom_call.1} parent=1 // pred_region
      _
    $region13: #{tpu_custom_call.1} parent=1 // pred_fallthru
      _
    %p15 = scmp.eq.s32.totalorder 0, 0
    // Predicated region
    $region14: #{tpu_custom_call.1} parent=1 // pred_check
      %p16 = pneg %p15
    $region15: #{tpu_custom_call.1} parent=1 // pred_check_branch
      %18 = sbr.rel (%p16) target = $region17
    $region16: #{tpu_custom_call.1} parent=1 // pred_region
      %19 = vst [vmem:[#allocation2] sm:$0xff] 0.0
      %vm20 = vcmask 31744
      %21 = vst.msk [vmem:[#allocation3] sm:$0xff] %vm20, -inf
    $region17: #{tpu_custom_call.1} parent=1 // pred_fallthru
      _
    %v22 = vld [vmem:[%s0] sm:$0xff]
    %v23 = vld [vmem:[%s1] sm:$0xff]
    %v24 = vadd.f32 %v23, 1.0
    %v25 = vmul.f32 %v22, %v22
    %v26 = vsub.f32 %v24, %v25
    %v27 = vmul.f32 %v23, 1.442695
    %v28 = vpow.pop %v27
    %v29 = vsub.f32 %v26, %v28
    %v30 = vld [vmem:[#allocation2] sm:$0xff]
    %v31 = vadd.f32 %v30, %v29
    %32 = vst [vmem:[#allocation2] sm:$0xff] %v31
    %v33 = vld [vmem:[%s2] sm:$0xff]
    %v34 = vld [vmem:[%s2 + $0x8] sm:$0xff]
    %v35 = vld [vmem:[%s2 + $0x10] sm:$0xff]
    %v36 = vld [vmem:[%s2 + $0x18] sm:$0xff]
    %v37 = vld [vmem:[%s2 + $0x20] sm:$0xff]
    %v38 = vld [vmem:[%s2 + $0x28] sm:$0xff]
    %v39 = vld [vmem:[%s2 + $0x30] sm:$0xff]
    %v40 = vld [vmem:[%s2 + $0x38] sm:$0xff]
    %v41 = vld [vmem:[%s2 + $0x40] sm:$0xff]
    %v42 = vld [vmem:[%s2 + $0x48] sm:$0xff]
    %v43 = vld [vmem:[%s2 + $0x50] sm:$0xff]
    %v44 = vld [vmem:[%s2 + $0x58] sm:$0xff]
    %v45 = vld [vmem:[%s2 + $0x60] sm:$0xff]
    %v46 = vld [vmem:[%s2 + $0x68] sm:$0xff]
    %v47 = vld [vmem:[%s2 + $0x70] sm:$0xff]
    %v48 = vld [vmem:[%s2 + $0x78] sm:$0xff]
    %49 = vmatprep.subr.mxu0 0.0
    %50 = vmatpush1.msra.mxu0 %v33
    %51 = vmatprep.subr.mxu0 0.0
    %52 = vmatpush1.msra.mxu0 %v34
    %53 = vmatprep.subr.mxu0 0.0
    %54 = vmatpush1.msra.mxu0 %v35
    %55 = vmatprep.subr.mxu0 0.0
    %56 = vmatpush1.msra.mxu0 %v36
    %57 = vmatprep.subr.mxu0 0.0
    %58 = vmatpush1.msra.mxu0 %v37
    %59 = vmatprep.subr.mxu0 0.0
    %60 = vmatpush1.msra.mxu0 %v38
    %61 = vmatprep.subr.mxu0 0.0
    %62 = vmatpush1.msra.mxu0 %v39
    %63 = vmatprep.subr.mxu0 0.0
    %64 = vmatpush1.msra.mxu0 %v40
    %65 = vmatprep.subr.mxu0 0.0
    %66 = vmatpush1.msra.mxu0 %v41
    %67 = vmatprep.subr.mxu0 0.0
    %68 = vmatpush1.msra.mxu0 %v42
    %69 = vmatprep.subr.mxu0 0.0
    %70 = vmatpush1.msra.mxu0 %v43
    %71 = vmatprep.subr.mxu0 0.0
    %72 = vmatpush1.msra.mxu0 %v44
    %73 = vmatprep.subr.mxu0 0.0
    %74 = vmatpush1.msra.mxu0 %v45
    %75 = vmatprep.subr.mxu0 0.0
    %76 = vmatpush1.msra.mxu0 %v46
    %77 = vmatprep.subr.mxu0 0.0
    %78 = vmatpush1.msra.mxu0 %v47
    %79 = vmatprep.subr.mxu0 0.0
    %80 = vmatpush1.msra.mxu0 %v48
    %81 = vmatprep.subr.mxu0 0.0
    %82 = vmatpush1.msra.mxu0 0.0
    %83 = vmatprep.subr.mxu0 0.0
    %84 = vmatpush1.msra.mxu0 0.0
    %85 = vmatprep.subr.mxu0 0.0
    %86 = vmatpush1.msra.mxu0 0.0
    %87 = vmatprep.subr.mxu0 0.0
    %88 = vmatpush1.msra.mxu0 0.0
    %89 = vmatprep.subr.mxu0 0.0
    %90 = vmatpush1.msra.mxu0 0.0
    %91 = vmatprep.subr.mxu0 0.0
    %92 = vmatpush1.msra.mxu0 0.0
    %93 = vmatprep.subr.mxu0 0.0
    %94 = vmatpush1.msra.mxu0 0.0
    %95 = vmatprep.subr.mxu0 0.0
    %96 = vmatpush1.msra.mxu0 0.0
    %97 = vmatprep.subr.mxu0 0.0
    %98 = vmatpush1.msra.mxu0 0.0
    %99 = vmatprep.subr.mxu0 0.0
    %100 = vmatpush1.msra.mxu0 0.0
    %101 = vmatprep.subr.mxu0 0.0
    %102 = vmatpush1.msra.mxu0 0.0
    %103 = vmatprep.subr.mxu0 0.0
    %104 = vmatpush1.msra.mxu0 0.0
    %105 = vmatprep.subr.mxu0 0.0
    %106 = vmatpush1.msra.mxu0 0.0
    %107 = vmatprep.subr.mxu0 0.0
    %108 = vmatpush1.msra.mxu0 0.0
    %109 = vmatprep.subr.mxu0 0.0
    %110 = vmatpush1.msra.mxu0 0.0
    %111 = vmatprep.subr.mxu0 0.0
    %112 = vmatpush1.msra.mxu0 0.0
    %113 = vmatprep.mubr.f32.mxu0 0.0
    %114 = vmatmul.mubr.f32.gmra.mrb[0].mxu0 %v29
    %v115 = vpop.f32.mrb[0].mxu0
    %v116 = vadd.f32 0.0, %v115
    %v117 = vpop.f32.mrb[0].mxu0
    %118 = vdwg.mxu0
    %v119 = vmul.f32 %v116, -0.5
    // Predicated region
    $region18: #{tpu_custom_call.1} parent=1 // pred_check
      %p120 = pneg %p15
    $region19: #{tpu_custom_call.1} parent=1 // pred_check_branch
      %122 = sbr.rel (%p120) target = $region21
    $region20: #{tpu_custom_call.1} parent=1 // pred_region
      %s123 = smul.u32 0, 8
      %v124 = vlaneseq
      %v125 = vshrl.u32 %v124, 7
      %v126 = vstv %s123
      %v127 = vadd.s32 %v126, %v125
      %v128 = vlaneseq
      %v129 = vand.u32 %v128, 127
      %v130 = vmul.u32 %v127, 4
      %v131 = vadd.s32 %v130, %v129
      %vm132 = vcmp.lt.s32.totalorder %v131, 8
      %v133 = vld [vmem:[#allocation3] sm:$0xff]
      %v134 = vsel %vm132, %v119, -inf
      %v135 = vmax.f32 %v133, %v134
      %vm136 = vcmask 31744
      %137 = vst.msk [vmem:[#allocation3] sm:$0xff] %vm136, %v135
    $region21: #{tpu_custom_call.1} parent=1 // pred_fallthru
      _
    %p138 = scmp.ne.s32.totalorder 0, 0
    // Predicated region
    $region22: #{tpu_custom_call.1} parent=1 // pred_check
      %p139 = pneg %p138
    $region23: #{tpu_custom_call.1} parent=1 // pred_check_branch
      %141 = sbr.rel (%p139) target = $region25
    $region24: #{tpu_custom_call.1} parent=1 // pred_region
      %v142 = vld [vmem:[#allocation3] sm:$0xff]
      %v143 = vmax.f32 %v142, %v119
      %vm144 = vcmask 31744
      %145 = vst.msk [vmem:[#allocation3] sm:$0xff] %vm144, %v143
    $region25: #{tpu_custom_call.1} parent=1 // pred_fallthru
      _
    // Predicated region
    $region26: #{tpu_custom_call.1} parent=1 // pred_check
      %p146 = pneg %p15
    $region27: #{tpu_custom_call.1} parent=1 // pred_check_branch
      %148 = sbr.rel (%p146) target = $region29
    $region28: #{tpu_custom_call.1} parent=1 // pred_region
      %v149 = vld [vmem:[#allocation2] sm:$0xff]
      %150 = vadd.xlane.f32.xlu0 %v149
      %v151 = vpop.xlane.xlu0 %150
      %v152 = vrot.slane %v151, 4
      %v153 = vadd.f32 %v151, %v152
      %v154 = vrot.slane %v153, 2
      %v155 = vadd.f32 %v153, %v154
      %v156 = vrot.slane %v155, 1
      %v157 = vadd.f32 %v155, %v156
      %s158 = vtos %v157
      %s159 = smul.f32 %s158, -0.5
      %s160 = scalar_lea.smem [#allocation4], 0
      %161 = sst [smem:[%s160]] %s159
      %v162 = vld [vmem:[#allocation3] sm:$0xff]
      %vm163 = vcmask 31744
      %v164 = vsel %vm163, %v162, -inf
      %165 = vmax.xlane.f32.xlu0 %v164
      %v166 = vpop.xlane.xlu0 %165
      %v167 = vrot.slane %v166, 4
      %v168 = vmax.f32 %v166, %v167
      %v169 = vrot.slane %v168, 2
      %v170 = vmax.f32 %v168, %v169
      %v171 = vrot.slane %v170, 1
      %v172 = vmax.f32 %v170, %v171
      %s173 = vtos %v172
      %s174 = scalar_lea.smem [#allocation4], 1
      %175 = sst [smem:[%s174]] %s173
    $region29: #{tpu_custom_call.1} parent=1 // pred_fallthru
      _
    // Predicated region
    $region30: #{tpu_custom_call.1} parent=1 // pred_check
      _
    $region31: #{tpu_custom_call.1} parent=1 // pred_check_branch
      %177 = sbr.rel (0) target = $region33
    $region32: #{tpu_custom_call.1} parent=1 // pred_region
      %s179 = ssub.s32 16, 16
      %180 = vsyncadd [#allocation5], %s179
      %183 = dma.smem_to_hbm [#allocation4], 16, %s3, [#allocation5]
    $region33: #{tpu_custom_call.1} parent=1 // pred_fallthru
      _
    // Predicated region
    $region34: #{tpu_custom_call.1} parent=1 // pred_check
      _
    $region35: #{tpu_custom_call.1} parent=1 // pred_check_branch
      %185 = sbr.rel (0) target = $region37
    $region36: #{tpu_custom_call.1} parent=1 // pred_region
      %186 = dma.done [#allocation5], 16
    $region37: #{tpu_custom_call.1} parent=1 // pred_fallthru
      _
    %187 = sfence
    %188 = vsyncpa [#allocation5], 1

</llo_original>
